<compile_context>
chip_gen: v6e
topology: v6e:2x2x1
jax: 0.10.0
libtpu: 0.0.40
codegen_flags: <defaults>
</compile_context>

<pallas_src>
import functools

import jax
import jax.numpy as jnp
from jax.experimental import pallas as pl
from jax.experimental.pallas import tpu as pltpu

BN_EPS = 1e-5
_LANE = 128
_SUBLANE = 8


def _round_up(v, m):
    return ((v + m - 1) // m) * m


# ---------------------------------------------------------------------------
# Phase 1: per-tile partial BatchNorm statistics.
#   h = x @ W1 (bf16 operands, f32 MXU accumulation), then per-feature
#   sum and sum-of-squares for this tile only.  Tiles are independent, so the
#   batch axis can be "parallel" (megacore on v7x); the wrapper reduces the
#   (n_tiles, 2, h_p) partials.
# ---------------------------------------------------------------------------
def _probe_stats_kernel(x_ref, w1_ref, partial_ref, *, matmul_dtype):
    h = jnp.dot(x_ref[...].astype(matmul_dtype), w1_ref[...],
                preferred_element_type=jnp.float32)
    partial_ref[0:1, :] = jnp.sum(h, axis=0, keepdims=True)
    partial_ref[1:2, :] = jnp.sum(h * h, axis=0, keepdims=True)


# ---------------------------------------------------------------------------
# Phase 2: recompute h = x @ W1 in VMEM, apply the precomputed BatchNorm
# scale/shift, ReLU, then the second Linear (+ bias).  Output is written at
# its native c_out width.
# ---------------------------------------------------------------------------
def _probe_out_kernel(x_ref, w1_ref, scale_ref, shift_ref, w2_ref, b2_ref,
                      o_ref, *, matmul_dtype):
    h = jnp.dot(x_ref[...].astype(matmul_dtype), w1_ref[...],
                preferred_element_type=jnp.float32)
    h_act = jnp.maximum(h * scale_ref[...] + shift_ref[...], 0.0)
    out = jnp.dot(h_act.astype(matmul_dtype), w2_ref[...],
                  preferred_element_type=jnp.float32)
    o_ref[...] = (out + b2_ref[...]).astype(o_ref.dtype)


def linear_probe_forward(x, w1_t, gamma, beta, w2_t, b2, *,
                         block_n=2048, matmul_dtype=jnp.bfloat16,
                         vmem_limit_bytes=32 * 1024 * 1024):
    """x: [N, c_in] f32.  w1_t: [c_in, hidden], w2_t: [hidden, c_out] (pre-transposed)."""
    N, c_in = x.shape
    c_in_w, hidden = w1_t.shape
    hidden_w, c_out = w2_t.shape
    assert c_in == c_in_w and hidden == hidden_w

    f32 = jnp.float32
    x = x.astype(f32)
    mm_bytes = int(jnp.dtype(matmul_dtype).itemsize)

    # Lane-dense hidden axis only; zero padding is inert (see header comment).
    h_p = _round_up(hidden, _LANE)

    # Batch tiling (sublane aligned, capped at the padded batch size).
    block_n = _round_up(min(max(block_n, _SUBLANE), _round_up(N, _SUBLANE)), _SUBLANE)
    n_p = _round_up(N, block_n)
    n_tiles = n_p // block_n
    # Rows padded with zeros only if needed: padded rows give h == 0, which
    # contributes nothing to sum/sumsq; stats are divided by the real N.
    x_in = x if n_p == N else jnp.pad(x, ((0, n_p - N), (0, 0)))

    # Tiny weight tensors: pad the hidden axis to h_p, cast to bf16.
    w1_p = jnp.pad(w1_t.astype(f32), ((0, 0), (0, h_p - hidden))).astype(matmul_dtype)
    w2_p = jnp.pad(w2_t.astype(f32), ((0, h_p - hidden), (0, 0))).astype(matmul_dtype)
    gamma_p = jnp.pad(gamma.astype(f32), (0, h_p - hidden))
    beta_p = jnp.pad(beta.astype(f32), (0, h_p - hidden))
    b2_row = b2.astype(f32).reshape(1, c_out)

    # ---- Phase 1: per-tile partial (sum, sum-of-squares) --------------------
    partials = pl.pallas_call(
        functools.partial(_probe_stats_kernel, matmul_dtype=matmul_dtype),
        grid=(n_tiles,),
        in_specs=[
            pl.BlockSpec((block_n, c_in), lambda i: (i, 0)),   # native-width x tile
            pl.BlockSpec((c_in, h_p), lambda i: (0, 0)),       # W1 resident
        ],
        out_specs=pl.BlockSpec((None, 2, h_p), lambda i: (i, 0, 0)),  # per-tile partials
        out_shape=jax.ShapeDtypeStruct((n_tiles, 2, h_p), f32),
        compiler_params=pltpu.CompilerParams(
            dimension_semantics=("parallel",),     # independent tiles -> megacore
            vmem_limit_bytes=vmem_limit_bytes,
        ),
        cost_estimate=pl.CostEstimate(
            flops=2 * n_p * c_in * h_p + 3 * n_p * h_p,
            transcendentals=0,
            bytes_accessed=n_p * c_in * 4 + c_in * h_p * mm_bytes
            + n_tiles * 2 * h_p * 4,
        ),
    )(x_in, w1_p)

    # Reduce the tiny partials and fold BatchNorm into per-feature scale/shift
    # (done once here instead of every phase-2 grid step).
    stats = jnp.sum(partials, axis=0)                       # [2, h_p]
    inv_n = jnp.float32(1.0 / N)                            # divide by the REAL N
    mean = stats[0] * inv_n
    var = jnp.maximum(stats[1] * inv_n - mean * mean, 0.0)  # clamp cancellation
    inv_std = jax.lax.rsqrt(var + BN_EPS)
    scale = (gamma_p * inv_std).reshape(1, h_p)
    shift = (beta_p - mean * gamma_p * inv_std).reshape(1, h_p)

    # ---- Phase 2: recompute h, BN(scale,shift) + ReLU + h @ W2 + b2 ---------
    out_full = pl.pallas_call(
        functools.partial(_probe_out_kernel, matmul_dtype=matmul_dtype),
        grid=(n_tiles,),
        in_specs=[
            pl.BlockSpec((block_n, c_in), lambda i: (i, 0)),   # x tile (re-read)
            pl.BlockSpec((c_in, h_p), lambda i: (0, 0)),       # W1 resident
            pl.BlockSpec((1, h_p), lambda i: (0, 0)),          # BN scale
            pl.BlockSpec((1, h_p), lambda i: (0, 0)),          # BN shift
            pl.BlockSpec((h_p, c_out), lambda i: (0, 0)),      # W2 resident
            pl.BlockSpec((1, c_out), lambda i: (0, 0)),        # b2
        ],
        out_specs=pl.BlockSpec((block_n, c_out), lambda i: (i, 0)),  # unpadded out
        out_shape=jax.ShapeDtypeStruct((n_p, c_out), f32),
        compiler_params=pltpu.CompilerParams(
            dimension_semantics=("parallel",),     # independent rows -> megacore
            vmem_limit_bytes=vmem_limit_bytes,
        ),
        cost_estimate=pl.CostEstimate(
            flops=2 * n_p * c_in * h_p + 2 * n_p * h_p * c_out + 4 * n_p * h_p,
            transcendentals=0,
            bytes_accessed=n_p * c_in * 4 + c_in * h_p * mm_bytes
            + h_p * c_out * mm_bytes + n_p * c_out * 4 + 2 * h_p * 4 + c_out * 4,
        ),
    )(x_in, w1_p, scale, shift, w2_p, b2_row)

    return out_full if n_p == N else out_full[:N]


def _reference(x, w1_t, gamma, beta, w2_t, b2, matmul_dtype=jnp.bfloat16):
    # Same arithmetic as the PyTorch module (train-mode BatchNorm1d, biased
    # variance, eps=1e-5); matmul operands rounded to bf16 to mirror the kernel.
    h = jnp.dot(x.astype(matmul_dtype), w1_t.astype(matmul_dtype),
                preferred_element_type=jnp.float32)
    mean = h.mean(axis=0, keepdims=True)
    var = ((h - mean) ** 2).mean(axis=0, keepdims=True)
    hn = (h - mean) * jax.lax.rsqrt(var + BN_EPS) * gamma + beta
    hn = jnp.maximum(hn, 0.0)
    out = jnp.dot(hn.astype(matmul_dtype), w2_t.astype(matmul_dtype),
                  preferred_element_type=jnp.float32)
    return out + b2


if __name__ == "__main__":
    # Small shapes consistent with the module: c_in=32, reduction=4 -> hidden=8.
    # N=60 with block_n=32 exercises both the cross-tile partial-stat
    # reduction (2 tiles) and the batch-row padding path.
    N, c_in, reduction, c_out = 60, 32, 4, 16
    hidden = c_in // reduction

    key = jax.random.PRNGKey(0)
    kx, kw1, kw2 = jax.random.split(key, 3)

    x = jax.random.normal(kx, (N, c_in), dtype=jnp.float32)

    # Kaiming-normal (fan_in) init, zero bias — like the module's __init__.
    w1 = jax.random.normal(kw1, (hidden, c_in), dtype=jnp.float32) * jnp.sqrt(2.0 / c_in)
    w2 = jax.random.normal(kw2, (c_out, hidden), dtype=jnp.float32) * jnp.sqrt(2.0 / hidden)
    b2 = jnp.zeros((c_out,), dtype=jnp.float32)
    gamma = jnp.ones((hidden,), dtype=jnp.float32)   # BatchNorm1d affine weight
    beta = jnp.zeros((hidden,), dtype=jnp.float32)   # BatchNorm1d affine bias

    # Pre-transpose linear weights so the kernel does x @ W^T as x @ w_t.
    w1_t = w1.T  # [c_in, hidden]
    w2_t = w2.T  # [hidden, c_out]

    out = linear_probe_forward(x, w1_t, gamma, beta, w2_t, b2, block_n=32)
    out = jax.block_until_ready(out)

    ref = _reference(x, w1_t, gamma, beta, w2_t, b2)
    assert out.shape == (N, c_out)
    assert jnp.allclose(out, ref, atol=2e-3, rtol=2e-3), (
        f"mismatch vs reference, max abs diff = {jnp.max(jnp.abs(out - ref))}")

    # TODO(synk): TrainLinearProbe / EvaluateLinearProbe (optimizer, CE loss,
    # dataloaders) are host-side training utilities and are not kernelized.
    print("KERNEL_OK")
</pallas_src>

<mosaic_0001>
module attributes {stable_mosaic.version = 11 : i64} {
  func.func @_probe_stats_kernel(%arg0: i32, %arg1: memref<32x32xf32, #tpu.memory_space<vmem>>, %arg2: memref<32x128xbf16, #tpu.memory_space<vmem>>, %arg3: memref<1x2x128xf32, #tpu.memory_space<vmem>>) attributes {dimension_semantics = [#tpu.dimension_semantics<parallel>], iteration_bounds = array<i64: 2>, scalar_prefetch = 0 : i64, scratch_operands = 0 : i64, tpu.core_type = #tpu.core_type<tc>, window_params = [{transform_indices = @transform_0, window_bounds = array<i64: 32, 32>}, {pipeline_mode = #tpu.pipeline_mode<synchronous>, transform_indices = @transform_1, window_bounds = array<i64: 32, 128>}, {transform_indices = @transform_2, window_bounds = array<i64: 1, 2, 128>}]} {
    %c0 = arith.constant 0 : index
    %c0_0 = arith.constant 0 : index
    %0 = vector.load %arg1[%c0, %c0_0] : memref<32x32xf32, #tpu.memory_space<vmem>>, vector<32x32xf32>
    %1 = arith.truncf %0 : vector<32x32xf32> to vector<32x32xbf16>
    %c0_1 = arith.constant 0 : index
    %c0_2 = arith.constant 0 : index
    %2 = vector.load %arg2[%c0_1, %c0_2] : memref<32x128xbf16, #tpu.memory_space<vmem>>, vector<32x128xbf16>
    %cst = arith.constant dense<0.000000e+00> : vector<32x128xf32>
    %3 = tpu.matmul %1, %2, %cst {dimension_numbers = #tpu.dot_dimension_numbers<[1], [0], [0], [1], [0, 0, 1, 1], [], []>} : vector<32x32xbf16>, vector<32x128xbf16>, vector<32x128xf32> -> vector<32x128xf32>
    %cst_3 = arith.constant dense<0.000000e+00> : vector<128xf32>
    %4 = vector.multi_reduction <add>, %3, %cst_3 [0] : vector<32x128xf32> to vector<128xf32>
    %5 = vector.shape_cast %4 : vector<128xf32> to vector<1x128xf32>
    %c0_4 = arith.constant 0 : index
    %c0_5 = arith.constant 0 : index
    %c0_6 = arith.constant 0 : index
    %6 = vector.load %arg3[%c0_4, %c0_5, %c0_6] : memref<1x2x128xf32, #tpu.memory_space<vmem>>, vector<1x1x128xf32>
    %7 = vector.shape_cast %6 : vector<1x1x128xf32> to vector<1x128xf32>
    %8 = vector.shape_cast %5 : vector<1x128xf32> to vector<1x1x128xf32>
    tpu.vector_store %arg3[%c0_4, %c0_5, %c0_6], %8 {strides = array<i32>} : memref<1x2x128xf32, #tpu.memory_space<vmem>>, vector<1x1x128xf32>,
    %9 = arith.mulf %3, %3 : vector<32x128xf32>
    %cst_7 = arith.constant dense<0.000000e+00> : vector<128xf32>
    %10 = vector.multi_reduction <add>, %9, %cst_7 [0] : vector<32x128xf32> to vector<128xf32>
    %11 = vector.shape_cast %10 : vector<128xf32> to vector<1x128xf32>
    %c0_8 = arith.constant 0 : index
    %c1 = arith.constant 1 : index
    %c0_9 = arith.constant 0 : index
    %12 = vector.load %arg3[%c0_8, %c1, %c0_9] : memref<1x2x128xf32, #tpu.memory_space<vmem>>, vector<1x1x128xf32>
    %13 = vector.shape_cast %12 : vector<1x1x128xf32> to vector<1x128xf32>
    %14 = vector.shape_cast %11 : vector<1x128xf32> to vector<1x1x128xf32>
    tpu.vector_store %arg3[%c0_8, %c1, %c0_9], %14 {strides = array<i32>} : memref<1x2x128xf32, #tpu.memory_space<vmem>>, vector<1x1x128xf32>,
    return
  }
  func.func @transform_0(%arg0: i32) -> (i32, i32) {
    %c0_i32 = arith.constant 0 : i32
    %c0_i32_0 = arith.constant 0 : i32
    return %arg0, %c0_i32 : i32, i32
  }
  func.func @transform_1(%arg0: i32) -> (i32, i32) {
    %c0_i32 = arith.constant 0 : i32
    %c0_i32_0 = arith.constant 0 : i32
    %c0_i32_1 = arith.constant 0 : i32
    return %c0_i32, %c0_i32_0 : i32, i32
  }
  func.func @transform_2(%arg0: i32) -> (i32, i32, i32) {
    %c0_i32 = arith.constant 0 : i32
    %c0_i32_0 = arith.constant 0 : i32
    %c0_i32_1 = arith.constant 0 : i32
    return %arg0, %c0_i32, %c0_i32_0 : i32, i32, i32
  }
}

</mosaic_0001>

<llo_original>
// kernel: tpu_custom_call.1
$region0: #{tpu_custom_call.1}
  #allocation0 [shape = 'u32[]', space=smem, size = 0x4, offset = 0x4, fixed_abs, tag = 'smem constant byte address 0x4 - core index']
  #allocation1 [shape = 'u32[144,128]{1,0:T(1,128)}', space=vmem, size = 0x12000, scoped, tag = 'internal scratch']
  %s0 = inlined_call_operand.vmem [shape: f32[64,32], index: 0, kind: input, shape index: {}]
  %s1 = inlined_call_operand.vmem [shape: bf16[32,128], index: 1, kind: input, shape index: {}]
  %s2 = inlined_call_operand.hbm [shape: f32[2,2,128], index: 2, kind: output, shape index: {}]
  %s3 = sld [smem:[#allocation0]]
  $region41: #{tpu_custom_call.1} parent=0
    _
  %s5 = ssub.s32 1, %s3
  %s6 = scalar_select 0, %s5, %s3
  $region1: #{tpu_custom_call.1} parent=0
    #allocation2 [shape = 'u8[2048]{0}', space=vmem, size = 0x800, scoped, tag = 'output window, operand 0']
    #allocation3 [shape = 's32[2]{0}', space=sflag, size = 0x8, scoped, tag = 'scoped memory for tpu_custom_call.1']
    %7 = vsyncpa [#allocation3], 0
    %s8 = scalar_lea.sflag [#allocation3], 1
    %9 = vsyncpa %s8, 0
    loop: start=0, step=1, limit=4
    $region2: #{tpu_custom_call.1} parent=1 // loop_pre_header
      _
    $region3: #{tpu_custom_call.1} parent=1 // loop_header
      %s11 = sphi 0, %s15
      %p12 = scmp.ge.s32.totalorder %s11, 4
      %s21 = sphi 0, %s23
      %s24 = sphi 0, %s21
      %s25 = sphi 0, %s24
      %s41 = sphi 0, %s25
      %s45 = sphi 0, %s45
      %s47 = sphi 0, %s45
      %s48 = sphi 0, %s47
      %s62 = sphi 0, %s48
      %s68 = sphi 0, %s70
      %s71 = sphi 0, %s68
      %s72 = sphi 0, %s71
      %s88 = sphi 0, %s72
    $region4: #{tpu_custom_call.1} parent=1 // loop_header_branch
      %14 = sbr.rel (%p12) target = $region8
    $region5: #{tpu_custom_call.1} parent=1 // loop_body
      %s16 = ssub.s32 %s11, 1
      %s17 = ssub.s32 %s11, 2
      %s18 = sadd.s32 %s11, 1
      %s19 = ssub.s32 %s11, %s18
      %p20 = scmp.eq.s32.totalorder %s19, 0
      %s22 = sadd.s32 %s21, 1
      %s23 = scalar_select %p20, %s21, %s22
      %p26 = pneg %p20
      %p27 = scmp.eq.s32.totalorder %s11, 1
      %p28 = por %p26, %p27
      %p29 = scmp.ne.s32.totalorder %s21, %s24
      %p30 = scmp.eq.s32.totalorder %s11, 0
      %p31 = por %p29, %p30
      %p32 = scmp.ne.s32.totalorder %s21, %s24
      %p33 = scmp.eq.s32.totalorder %s16, 1
      %p34 = por %p32, %p33
      %p35 = scmp.ne.s32.totalorder %s24, %s25
      %p36 = scmp.eq.s32.totalorder %s16, 0
      %p37 = por %p35, %p36
      %p38 = scmp.ne.s32.totalorder %s24, %s25
      %p39 = scmp.eq.s32.totalorder %s17, 1
      %p40 = por %p38, %p39
      %p42 = scmp.ne.s32.totalorder %s25, %s41
      %p43 = scmp.eq.s32.totalorder %s17, 0
      %p44 = por %p42, %p43
      %s46 = sadd.s32 %s45, 1
      %p49 = scmp.eq.s32.totalorder %s11, 1
      %p50 = scmp.ne.s32.totalorder %s45, %s47
      %p51 = scmp.eq.s32.totalorder %s11, 0
      %p52 = por %p50, %p51
      %p53 = scmp.ne.s32.totalorder %s45, %s47
      %p54 = scmp.eq.s32.totalorder %s16, 1
      %p55 = por %p53, %p54
      %p56 = scmp.ne.s32.totalorder %s47, %s48
      %p57 = scmp.eq.s32.totalorder %s16, 0
      %p58 = por %p56, %p57
      %p59 = scmp.ne.s32.totalorder %s47, %s48
      %p60 = scmp.eq.s32.totalorder %s17, 1
      %p61 = por %p59, %p60
      %p63 = scmp.ne.s32.totalorder %s48, %s62
      %p64 = scmp.eq.s32.totalorder %s17, 0
      %p65 = por %p63, %p64
      %s66 = ssub.s32 %s11, %s18
      %p67 = scmp.eq.s32.totalorder %s66, 0
      %s69 = sadd.s32 %s68, 1
      %s70 = scalar_select %p67, %s68, %s69
      %p73 = pneg %p67
      %p74 = scmp.eq.s32.totalorder %s11, 1
      %p75 = por %p73, %p74
      %p76 = scmp.ne.s32.totalorder %s68, %s71
      %p77 = scmp.eq.s32.totalorder %s11, 0
      %p78 = por %p76, %p77
      %p79 = scmp.ne.s32.totalorder %s68, %s71
      %p80 = scmp.eq.s32.totalorder %s16, 1
      %p81 = por %p79, %p80
      %p82 = scmp.ne.s32.totalorder %s71, %s72
      %p83 = scmp.eq.s32.totalorder %s16, 0
      %p84 = por %p82, %p83
      %p85 = scmp.ne.s32.totalorder %s71, %s72
      %p86 = scmp.eq.s32.totalorder %s17, 1
      %p87 = por %p85, %p86
      %p89 = scmp.ne.s32.totalorder %s72, %s88
      %p90 = scmp.eq.s32.totalorder %s17, 0
      %p91 = por %p89, %p90
      %p92 = scmp.le.s32.totalorder 1, %s11
      %p93 = scmp.lt.s32.totalorder %s11, 3
      %p94 = pnand %p92, %p93
      %p95 = pneg %p94
      // Predicated region
      $region9: #{tpu_custom_call.1} parent=5 // pred_check
        _
      $region10: #{tpu_custom_call.1} parent=5 // pred_check_branch
        %97 = sbr.rel (%p94) target = $region12
      $region11: #{tpu_custom_call.1} parent=5 // pred_region
        %s98 = ssub.s32 %s11, 1
        // Predicated region
        $region13: #{tpu_custom_call.1} parent=11 // pred_check
          %p99 = pneg %p58
        $region14: #{tpu_custom_call.1} parent=11 // pred_check_branch
          %101 = sbr.rel (%p99) target = $region16
        $region15: #{tpu_custom_call.1} parent=11 // pred_region
          _
        $region16: #{tpu_custom_call.1} parent=11 // pred_fallthru
          _
      $region12: #{tpu_custom_call.1} parent=5 // pred_fallthru
        _
      %p102 = scmp.lt.s32.totalorder %s11, 2
      // Predicated region
      $region17: #{tpu_custom_call.1} parent=5 // pred_check
        %p103 = pneg %p102
      $region18: #{tpu_custom_call.1} parent=5 // pred_check_branch
        %105 = sbr.rel (%p103) target = $region20
      $region19: #{tpu_custom_call.1} parent=5 // pred_region
        // Predicated region
        $region21: #{tpu_custom_call.1} parent=19 // pred_check
          %p106 = pneg %p31
        $region22: #{tpu_custom_call.1} parent=19 // pred_check_branch
          %108 = sbr.rel (%p106) target = $region24
        $region23: #{tpu_custom_call.1} parent=19 // pred_region
          %s109 = smul.u32 4, %s11
          %p110 = scmp.lt.s32.totalorder %s109, 7
          %s111 = scalar_select %p110, %s109, 7
          %s112 = smul.addr %s111, 8
          %s113 = scalar_lea.vmem %s0, %s112
          %s114 = smul.u32 4, %s11
        $region24: #{tpu_custom_call.1} parent=19 // pred_fallthru
          _
      $region20: #{tpu_custom_call.1} parent=5 // pred_fallthru
        _
      %p115 = scmp.le.s32.totalorder 1, %s11
      %p116 = scmp.lt.s32.totalorder %s11, 3
      %p117 = pnand %p115, %p116
      %p118 = pneg %p117
      // Predicated region
      $region25: #{tpu_custom_call.1} parent=5 // pred_check
        _
      $region26: #{tpu_custom_call.1} parent=5 // pred_check_branch
        %120 = sbr.rel (%p117) target = $region28
      $region27: #{tpu_custom_call.1} parent=5 // pred_region
        %s121 = ssub.s32 %s11, 1
        %s122 = smul.u32 4, %s16
        %p123 = scmp.lt.s32.totalorder %s122, 7
        %s124 = scalar_select %p123, %s122, 7
        %s125 = smul.addr %s124, 8
        %s126 = scalar_lea.vmem %s0, %s125
        %p127 = pneg %p37
        %p128 = pneg %p34
        %p129 = pneg %p58
        %p130 = pneg %p55
        %p131 = pneg %p84
        %p132 = pneg %p81
        %s133 = sand.u32 %s71, 1
        %s134 = scalar_lea.sflag [#allocation3], %s133
        %s135 = sand.u32 %s71, 1
        %s136 = smul.addr %s135, 2
        %s137 = scalar_lea.vmem [#allocation2], %s136
        %s138 = smul.u32 4, %s16
        %p139 = scmp.lt.s32.totalorder %s138, 7
        %s140 = scalar_select %p139, %s138, 7
        %s141 = smul.addr %s140, 8
        %s142 = scalar_lea.vmem %s0, %s141
        %s143 = smul.u32 4, %s16
        %v145 = vld [vmem:[%s142] sm:$0xff]
        %v146 = vld [vmem:[%s142 + $0x8] sm:$0xff]
        %v147 = vld [vmem:[%s142 + $0x10] sm:$0xff]
        %v148 = vld [vmem:[%s142 + $0x18] sm:$0xff]
        %v149 = vpack.c.bf16 %v146, %v145
        %v150 = vpack.c.bf16 %v148, %v147
        %v151 = vld [vmem:[%s1] sm:$0xf]
        %v152 = vld [vmem:[%s1 + $0x4] sm:$0xf]
        %v153 = vld [vmem:[%s1 + $0x8] sm:$0xf]
        %v154 = vld [vmem:[%s1 + $0xc] sm:$0xf]
        %v159 = vunpack.c.l.b16 %v151
        %v160 = vunpack.c.l.b16 %v152
        %v161 = vunpack.c.l.b16 %v153
        %v162 = vunpack.c.l.b16 %v154
        %v163 = vpack.c.b16 %v160, %v159
        %v164 = vpack.c.b16 %v162, %v161
        %vm167 = vcmask 261120
        %v169 = vsel %vm167, %v149, 0
        %v172 = vsel %vm167, %v150, 0
        %174 = vmatprep.subr.bf16.mxu0 0
        %175 = vmatpush1.bf16.msra.mxu0 0
        %176 = vmatprep.subr.bf16.mxu0 0
        %177 = vmatpush1.bf16.msra.mxu0 0
        %178 = vmatprep.subr.bf16.mxu0 0
        %179 = vmatpush1.bf16.msra.mxu0 0
        %180 = vmatprep.subr.bf16.mxu0 0
        %181 = vmatpush1.bf16.msra.mxu0 0
        %182 = vmatprep.subr.bf16.mxu0 0
        %183 = vmatpush1.bf16.msra.mxu0 0
        %184 = vmatprep.subr.bf16.mxu0 0
        %185 = vmatpush1.bf16.msra.mxu0 0
        %186 = vmatprep.subr.bf16.mxu0 0
        %187 = vmatpush1.bf16.msra.mxu0 %v164
        %188 = vmatprep.subr.bf16.mxu0 0
        %189 = vmatpush1.bf16.msra.mxu0 %v163
        %190 = vmatprep.subr.bf16.mxu0 0
        %191 = vmatpush2.bf16.msra.mxu0 0
        %192 = vmatprep.subr.bf16.mxu0 0
        %193 = vmatpush2.bf16.msra.mxu0 0
        %194 = vmatprep.subr.bf16.mxu0 0
        %195 = vmatpush2.bf16.msra.mxu0 0
        %196 = vmatprep.subr.bf16.mxu0 0
        %197 = vmatpush2.bf16.msra.mxu0 0
        %198 = vmatprep.subr.bf16.mxu0 0
        %199 = vmatpush2.bf16.msra.mxu0 0
        %200 = vmatprep.subr.bf16.mxu0 0
        %201 = vmatpush2.bf16.msra.mxu0 0
        %202 = vmatprep.subr.bf16.mxu0 0
        %203 = vmatpush2.bf16.msra.mxu0 0
        %204 = vmatprep.subr.bf16.mxu0 0
        %205 = vmatpush2.bf16.msra.mxu0 0
        %206 = vmatprep.mubr.bf16.mxu0 0
        %207 = vmatmul.mubr.bf16.gmra.mxu0 %v169
        %v208 = vpop.f32.mrf.mxu0
        %v209 = vadd.f32 0.0, %v208
        %v210 = vpop.f32.mrf.mxu0
        %v211 = vpop.f32.mrf.mxu0
        %v212 = vadd.f32 0.0, %v211
        %v213 = vpop.f32.mrf.mxu0
        %214 = vmatprep.mubr.bf16.mxu0 0
        %215 = vmatmul.mubr.bf16.gmra.mxu0 %v172
        %v216 = vpop.f32.mrf.mxu0
        %v217 = vadd.f32 0.0, %v216
        %v218 = vpop.f32.mrf.mxu0
        %v219 = vpop.f32.mrf.mxu0
        %v220 = vadd.f32 0.0, %v219
        %v221 = vpop.f32.mrf.mxu0
        %222 = vdwg.mxu0
        %v223 = vadd.f32 %v209, %v212
        %v224 = vadd.f32 %v223, %v217
        %v225 = vadd.f32 %v224, %v220
        %v226 = vrot.slane %v225, 4
        %v227 = vadd.f32 %v225, %v226
        %v228 = vrot.slane %v227, 2
        %v229 = vadd.f32 %v227, %v228
        %v230 = vrot.slane %v229, 1
        %v231 = vadd.f32 %v229, %v230
        %232 = vst [vmem:[%s137] sm:$0x1] %v231
        %v233 = vmul.f32 %v209, %v209
        %v234 = vmul.f32 %v212, %v212
        %v235 = vmul.f32 %v217, %v217
        %v236 = vmul.f32 %v220, %v220
        %v237 = vadd.f32 %v233, %v234
        %v238 = vadd.f32 %v237, %v235
        %v239 = vadd.f32 %v238, %v236
        %v240 = vrot.slane %v239, 4
        %v241 = vadd.f32 %v239, %v240
        %v242 = vrot.slane %v241, 2
        %v243 = vadd.f32 %v241, %v242
        %v244 = vrot.slane %v243, 1
        %v245 = vadd.f32 %v243, %v244
        %246 = vst [vmem:[%s137 + $0x1] sm:$0x1] %v245
        %s247 = sand.u32 %s71, 1
        %s248 = scalar_lea.sflag [#allocation3], %s247
        %s249 = sand.u32 %s71, 1
        %s250 = smul.addr %s249, 2
        %s251 = scalar_lea.vmem [#allocation2], %s250
        // Predicated region
        $region29: #{tpu_custom_call.1} parent=27 // pred_check
          %p252 = pneg %p81
        $region30: #{tpu_custom_call.1} parent=27 // pred_check_branch
          %254 = sbr.rel (%p252) target = $region32
        $region31: #{tpu_custom_call.1} parent=27 // pred_region
          %s256 = ssub.s32 32, 32
          %257 = vsyncadd %s248, %s256
          %s258 = smul.addr %s16, 32
          %s259 = scalar_lea.hbm %s2, %s258
          %s261 = sshll.u32 %s251, 4
          %s262 = int_to_ptr.vmem [resolvable:$true] %s261
          %264 = dma.vmem_to_hbm [thread:$0]  %s262, 32, %s259, %s248
        $region32: #{tpu_custom_call.1} parent=27 // pred_fallthru
          _
      $region28: #{tpu_custom_call.1} parent=5 // pred_fallthru
        _
      %p265 = scmp.le.s32.totalorder 2, %s11
      // Predicated region
      $region33: #{tpu_custom_call.1} parent=5 // pred_check
        %p266 = pneg %p265
      $region34: #{tpu_custom_call.1} parent=5 // pred_check_branch
        %268 = sbr.rel (%p266) target = $region36
      $region35: #{tpu_custom_call.1} parent=5 // pred_region
        %s269 = ssub.s32 %s11, 2
        // Predicated region
        $region37: #{tpu_custom_call.1} parent=35 // pred_check
          %p270 = pneg %p87
        $region38: #{tpu_custom_call.1} parent=35 // pred_check_branch
          %272 = sbr.rel (%p270) target = $region40
        $region39: #{tpu_custom_call.1} parent=35 // pred_region
          %s273 = sand.u32 %s72, 1
          %s274 = scalar_lea.sflag [#allocation3], %s273
          %s275 = sand.u32 %s72, 1
          %s276 = smul.addr %s275, 2
          %s277 = scalar_lea.vmem [#allocation2], %s276
          %278 = dma.done %s274, 32
        $region40: #{tpu_custom_call.1} parent=35 // pred_fallthru
          _
      $region36: #{tpu_custom_call.1} parent=5 // pred_fallthru
        _
    $region6: #{tpu_custom_call.1} parent=1 // loop_footer
      %s15 = sadd.s32 1, %s11
    $region7: #{tpu_custom_call.1} parent=1 // loop_footer_branch
      %10 = sbr.rel target = $region3
    $region8: #{tpu_custom_call.1} parent=1 // loop_exit
      _
    %279 = vsyncpa [#allocation3], 1
    %s280 = scalar_lea.sflag [#allocation3], 1
    %281 = vsyncpa %s280, 1

</llo_original>
